<compile_context>
chip_gen: v6e
topology: v6e:2x2x1
jax: 0.10.0
libtpu: 0.0.40
codegen_flags: <defaults>
</compile_context>

<pallas_src>
import jax
import jax.numpy as jnp
from jax.experimental import pallas as pl
from jax.experimental.pallas import tpu as pltpu

LANES = 128      # lane width: all weight blocks / activations / output padded to this
ROW_ALIGN = 16   # bf16 sublane packing (also valid, stricter, for f32)


def _round_up(x: int, m: int) -> int:
    return (x + m - 1) // m * m


# --------------------------- host-side weight prep -------------------------- #
def _pack_weights(weights, params, F, use_bf16):
    """Pack all weights into one lane-dense (rows, 128) slab + tiny f32 bias slab.

    Layout:
      * every block is 128 lanes wide, zero padded -> unmasked weight loads,
        no per-tile column-slice relayout.
      * hidden activations stay 128 lanes wide (zero weight cols + zero bias
        -> relu(0) == 0), so hidden layers i>=1 and W_h are padded to 128 rows
        too -> no lane slicing of h.
      * residual + latent projection folded on the host and stored as two
        blocks (W_h, W_x) -> no in-kernel concat.
      * block row offsets aligned to 16.
    Returns (w_slab, b_slab, hidden_metas, final_meta); metas are static
    (row_offset, contraction_dim) python ints.
    """
    H = params["hidden_dim"]
    L = params["latent_dim"]
    nhl = params["num_hidden_layers"]
    is_res = params["is_mlp_residual"]
    assert nhl >= 1, "MLP sequence encoder assumed to have >= 1 hidden layer"
    wdt = jnp.bfloat16 if use_bf16 else jnp.float32

    blocks, hidden_metas, bias_rows = [], [], []
    off = 0

    def add_block(w_f32, din, rows):
        nonlocal off
        blk = jnp.zeros((rows, LANES), jnp.float32)
        blk = blk.at[: w_f32.shape[0], : w_f32.shape[1]].set(w_f32)
        blocks.append(blk)
        meta = (off, din)
        off += rows
        return meta

    # hidden layers: layer 0 consumes x (F cols); later layers consume the
    # 128-wide padded activation (their weight rows H..127 are zero).
    for i in range(nhl):
        w = jnp.asarray(weights[f"w{i}"], jnp.float32)
        b = jnp.reshape(jnp.asarray(weights[f"b{i}"], jnp.float32), (-1,))
        if i == 0:
            hidden_metas.append(add_block(w, F, _round_up(F, ROW_ALIGN)))
        else:
            hidden_metas.append(add_block(w, LANES, LANES))
        bias_rows.append(jnp.zeros((LANES,), jnp.float32).at[:H].set(b))

    # fused output layer: residual + latent projection folded on the host.
    wo = jnp.asarray(weights["wo"], jnp.float32)
    bo = jnp.asarray(weights["bo"], jnp.float32)
    wout = jnp.asarray(weights["wout"], jnp.float32)
    bout = jnp.asarray(weights["bout"], jnp.float32)
    w_h = wo @ wout                                    # (H, L)
    b_fin = bo @ wout + bout                           # (1, L)
    meta_h = add_block(w_h, LANES, LANES)
    meta_x = None
    if is_res:
        wr = jnp.asarray(weights["wr"], jnp.float32)
        br = jnp.asarray(weights["br"], jnp.float32)
        meta_x = add_block(wr @ wout, F, _round_up(F, ROW_ALIGN))
        b_fin = b_fin + br @ wout
    bias_rows.append(
        jnp.zeros((LANES,), jnp.float32).at[:L].set(jnp.reshape(b_fin, (-1,))))

    w_slab = jnp.concatenate(blocks, axis=0).astype(wdt)
    b_slab = jnp.stack(bias_rows, axis=0)              # (nhl+1, 128) f32
    pad = _round_up(b_slab.shape[0], 8) - b_slab.shape[0]
    if pad:
        b_slab = jnp.pad(b_slab, ((0, pad), (0, 0)))
    return w_slab, b_slab, tuple(hidden_metas), (meta_h, meta_x)


# --------------------------------- kernel ----------------------------------- #
def _make_encoder_kernel(hidden_metas, final_meta, use_bf16):
    cdt = jnp.bfloat16 if use_bf16 else jnp.float32
    nhl = len(hidden_metas)
    (off_h, din_h), wx_meta = final_meta

    def kernel(x_ref, w_ref, b_ref, o_ref):
        x = x_ref[...]                                       # (tm, F), cdt
        h = x
        # hidden layers: h = relu(h @ W_i + b_i); f32 accumulate / bias / relu.
        for i, (off, din) in enumerate(hidden_metas):
            w = w_ref[off:off + din, :]                      # (din, 128), cdt
            b = b_ref[i:i + 1, :]                            # (1, 128), f32
            acc = jnp.dot(h, w, preferred_element_type=jnp.float32) + b
            h = jnp.maximum(acc, 0.0).astype(cdt)            # padded cols stay 0
        # fused output layer (residual + latent projection folded on host),
        # no concat: two matmuls into one f32 accumulator, lane-dense output.
        acc = jnp.dot(h, w_ref[off_h:off_h + din_h, :],
                      preferred_element_type=jnp.float32)
        if wx_meta is not None:
            off_x, din_x = wx_meta
            acc = acc + jnp.dot(x, w_ref[off_x:off_x + din_x, :],
                                preferred_element_type=jnp.float32)
        o_ref[...] = (acc + b_ref[nhl:nhl + 1, :]).astype(o_ref.dtype)

    return kernel


# -------------------------------- wrapper ----------------------------------- #
def base_encoder_forward(x, mask_x, encoded_absolute, encoded_map, mask_map,
                         params, weights, *, use_bf16=True,
                         row_tile=2048, min_grid_steps=8):
    """Forward pass of BaseEncoderNN (MLP sequence encoder, identity interaction).

    x: (B, A, T, S) history; mask_x: (B, A, T) bool.
    encoded_absolute / encoded_map / mask_map are carried for signature parity;
    the identity interaction ignores them (and mask_agent = mask_x.any(-1)),
    matching the 'else' branch of the PyTorch module.
    Returns (B, A, latent_dim) float32.

    Note: with use_bf16=True, x itself is stored/moved as bf16 (not just the
    matmul operands); accumulation stays f32.
    """
    B, A, T, S = x.shape
    M, F = B * A, T * S
    L = params["latent_dim"]

    in_dtype = jnp.bfloat16 if use_bf16 else jnp.float32
    x_flat = x.reshape(M, F).astype(in_dtype)

    # Row tile: as large as possible (cap row_tile), but keep >= ~min_grid_steps
    # grid steps when M allows it, so the pipeline reaches steady state and
    # megacore sharding (v7x) has work per core. Multiple of 16 (bf16 sublanes).
    tm = max(128, _round_up(pl.cdiv(M, min_grid_steps), ROW_ALIGN))
    tm = min(tm, int(row_tile), _round_up(M, ROW_ALIGN))
    tm = _round_up(tm, ROW_ALIGN)
    M_pad = _round_up(M, tm)
    if M_pad != M:
        x_flat = jnp.pad(x_flat, ((0, M_pad - M), (0, 0)))

    w_slab, b_slab, hidden_metas, final_meta = _pack_weights(
        weights, params, F, use_bf16)
    kernel = _make_encoder_kernel(hidden_metas, final_meta, use_bf16)

    out = pl.pallas_call(
        kernel,
        out_shape=jax.ShapeDtypeStruct((M_pad, LANES), jnp.float32),
        grid_spec=pltpu.PrefetchScalarGridSpec(
            num_scalar_prefetch=0,
            grid=(M_pad // tm,),
            in_specs=[
                pl.BlockSpec((tm, F), lambda i: (i, 0)),
                # grid-invariant slabs: fetched once, reused every tile
                pl.BlockSpec(w_slab.shape, lambda i: (0, 0)),
                pl.BlockSpec(b_slab.shape, lambda i: (0, 0)),
            ],
            out_specs=pl.BlockSpec((tm, LANES), lambda i: (i, 0)),
        ),
        compiler_params=pltpu.CompilerParams(
            dimension_semantics=("parallel",)),
    )(x_flat, w_slab, b_slab)

    # lane-dense (M_pad, 128) output -> slice latent_dim and reshape (free).
    return out[:M, :L].reshape(B, A, L)


# ------------------------------- param init --------------------------------- #
def init_weights(key, F, H, L, num_hidden_layers, is_residual):
    ws = {}
    keys = jax.random.split(key, 2 * (num_hidden_layers + 3))
    ki = 0

    def lin(kw, kb, din, dout):
        scale = 1.0 / jnp.sqrt(jnp.float32(din))
        w = jax.random.uniform(kw, (din, dout), jnp.float32, -scale, scale)
        b = jax.random.uniform(kb, (1, dout), jnp.float32, -scale, scale)
        return w, b

    din = F
    for i in range(num_hidden_layers):
        ws[f"w{i}"], ws[f"b{i}"] = lin(keys[ki], keys[ki + 1], din, H)
        ki += 2
        din = H
    ws["wo"], ws["bo"] = lin(keys[ki], keys[ki + 1], H, H); ki += 2
    if is_residual:
        ws["wr"], ws["br"] = lin(keys[ki], keys[ki + 1], F, H); ki += 2
    ws["wout"], ws["bout"] = lin(keys[ki], keys[ki + 1], H, L); ki += 2
    return ws


# -------------------------------- reference --------------------------------- #
def reference_forward(x, params, weights):
    """Direct (unfused) mirror of the PyTorch module in f32."""
    B, A, T, S = x.shape
    x_flat = x.reshape(B, A, T * S).astype(jnp.float32)
    h = x_flat
    for i in range(params["num_hidden_layers"]):
        h = jnp.maximum(h @ weights[f"w{i}"] + weights[f"b{i}"][0], 0.0)
    enc = h @ weights["wo"] + weights["bo"][0]
    if params["is_mlp_residual"]:
        enc = enc + x_flat @ weights["wr"] + weights["br"][0]
    return enc @ weights["wout"] + weights["bout"][0]


# ---------------------------------- main ------------------------------------ #
if __name__ == "__main__":
    key = jax.random.PRNGKey(0)

    T, S = 8, 4                      # num_steps, state_dim
    H, L = 32, 16                    # hidden_dim, latent_dim
    NOBJ, MAPF, ABSF = 6, 32, 32     # map objects / feature dims (unused: identity interaction)

    params = dict(hidden_dim=H, latent_dim=L, num_hidden_layers=2,
                  is_mlp_residual=True)

    k_w, k_small, k_large = jax.random.split(key, 3)
    weights = init_weights(k_w, T * S, H, L,
                           params["num_hidden_layers"],
                           params["is_mlp_residual"])

    def make_inputs(k, B, A):
        k_x, k_m, k_abs, k_map = jax.random.split(k, 4)
        x = jax.random.normal(k_x, (B, A, T, S), jnp.float32)
        mask_x = jax.random.bernoulli(k_m, 0.8, (B, A, T))
        encoded_absolute = jax.random.normal(k_abs, (B, A, ABSF), jnp.float32)
        encoded_map = jax.random.normal(k_map, (B, NOBJ, MAPF), jnp.float32)
        mask_map = jnp.ones((B, NOBJ), jnp.bool_)
        return x, mask_x, encoded_absolute, encoded_map, mask_map

    # ---- small shape (module-sized), strict f32 check ----------------------
    B, A = 2, 4
    xs = make_inputs(k_small, B, A)
    out = jax.block_until_ready(
        base_encoder_forward(*xs, params, weights, use_bf16=False))
    ref = reference_forward(xs[0], params, weights)
    assert out.shape == (B, A, L), out.shape
    assert jnp.allclose(out, ref, atol=1e-4, rtol=1e-4), \
        float(jnp.max(jnp.abs(out - ref)))

    # ---- larger shape exercising multi-tile grid (8 steps, tm=128) ---------
    B, A = 64, 16                    # M = 1024 -> grid = (8,)
    xl = make_inputs(k_large, B, A)
    out32 = jax.block_until_ready(
        base_encoder_forward(*xl, params, weights, use_bf16=False))
    ref_l = reference_forward(xl[0], params, weights)
    assert jnp.allclose(out32, ref_l, atol=1e-4, rtol=1e-4), \
        float(jnp.max(jnp.abs(out32 - ref_l)))

    # ---- default bf16 path (bf16 x + weights, f32 accumulation) ------------
    outbf = jax.block_until_ready(
        base_encoder_forward(*xl, params, weights))        # use_bf16=True default
    assert jnp.allclose(outbf, ref_l, atol=1e-1, rtol=1e-1), \
        float(jnp.max(jnp.abs(outbf - ref_l)))

    print("KERNEL_OK")
</pallas_src>

<mosaic_0001>
module attributes {stable_mosaic.version = 11 : i64} {
  func.func @kernel(%arg0: i32, %arg1: memref<16x32xf32, #tpu.memory_space<vmem>>, %arg2: memref<320x128xf32, #tpu.memory_space<vmem>>, %arg3: memref<8x128xf32, #tpu.memory_space<vmem>>, %arg4: memref<16x128xf32, #tpu.memory_space<vmem>>) attributes {dimension_semantics = [#tpu.dimension_semantics<parallel>], iteration_bounds = array<i64: 1>, scalar_prefetch = 0 : i64, scratch_operands = 0 : i64, tpu.core_type = #tpu.core_type<tc>, window_params = [{transform_indices = @transform_0, window_bounds = array<i64: 16, 32>}, {pipeline_mode = #tpu.pipeline_mode<synchronous>, transform_indices = @transform_1, window_bounds = array<i64: 320, 128>}, {pipeline_mode = #tpu.pipeline_mode<synchronous>, transform_indices = @transform_2, window_bounds = array<i64: 8, 128>}, {transform_indices = @transform_3, window_bounds = array<i64: 16, 128>}]} {
    %c0 = arith.constant 0 : index
    %c0_0 = arith.constant 0 : index
    %0 = vector.load %arg1[%c0, %c0_0] : memref<16x32xf32, #tpu.memory_space<vmem>>, vector<16x32xf32>
    %c0_1 = arith.constant 0 : index
    %c0_2 = arith.constant 0 : index
    %1 = vector.load %arg2[%c0_1, %c0_2] : memref<320x128xf32, #tpu.memory_space<vmem>>, vector<32x128xf32>
    %c0_3 = arith.constant 0 : index
    %c0_4 = arith.constant 0 : index
    %2 = vector.load %arg3[%c0_3, %c0_4] : memref<8x128xf32, #tpu.memory_space<vmem>>, vector<1x128xf32>
    %cst = arith.constant dense<0.000000e+00> : vector<16x128xf32>
    %3 = tpu.matmul %0, %1, %cst {dimension_numbers = #tpu.dot_dimension_numbers<[1], [0], [0], [1], [0, 0, 1, 1], [], []>} : vector<16x32xf32>, vector<32x128xf32>, vector<16x128xf32> -> vector<16x128xf32>
    %4 = vector.broadcast %2 : vector<1x128xf32> to vector<16x128xf32>
    %5 = arith.addf %3, %4 : vector<16x128xf32>
    %cst_5 = arith.constant 0.000000e+00 : f32
    %6 = vector.broadcast %cst_5 : f32 to vector<16x128xf32>
    %7 = arith.maximumf %5, %6 : vector<16x128xf32>
    %c32 = arith.constant 32 : index
    %c0_6 = arith.constant 0 : index
    %8 = vector.load %arg2[%c32, %c0_6] : memref<320x128xf32, #tpu.memory_space<vmem>>, vector<128x128xf32>
    %c1 = arith.constant 1 : index
    %c0_7 = arith.constant 0 : index
    %9 = vector.load %arg3[%c1, %c0_7] : memref<8x128xf32, #tpu.memory_space<vmem>>, vector<1x128xf32>
    %cst_8 = arith.constant dense<0.000000e+00> : vector<16x128xf32>
    %10 = tpu.matmul %7, %8, %cst_8 {dimension_numbers = #tpu.dot_dimension_numbers<[1], [0], [0], [1], [0, 0, 1, 1], [], []>} : vector<16x128xf32>, vector<128x128xf32>, vector<16x128xf32> -> vector<16x128xf32>
    %11 = vector.broadcast %9 : vector<1x128xf32> to vector<16x128xf32>
    %12 = arith.addf %10, %11 : vector<16x128xf32>
    %cst_9 = arith.constant 0.000000e+00 : f32
    %13 = vector.broadcast %cst_9 : f32 to vector<16x128xf32>
    %14 = arith.maximumf %12, %13 : vector<16x128xf32>
    %c160 = arith.constant 160 : index
    %c0_10 = arith.constant 0 : index
    %15 = vector.load %arg2[%c160, %c0_10] : memref<320x128xf32, #tpu.memory_space<vmem>>, vector<128x128xf32>
    %cst_11 = arith.constant dense<0.000000e+00> : vector<16x128xf32>
    %16 = tpu.matmul %14, %15, %cst_11 {dimension_numbers = #tpu.dot_dimension_numbers<[1], [0], [0], [1], [0, 0, 1, 1], [], []>} : vector<16x128xf32>, vector<128x128xf32>, vector<16x128xf32> -> vector<16x128xf32>
    %c288 = arith.constant 288 : index
    %c0_12 = arith.constant 0 : index
    %17 = vector.load %arg2[%c288, %c0_12] : memref<320x128xf32, #tpu.memory_space<vmem>>, vector<32x128xf32>
    %cst_13 = arith.constant dense<0.000000e+00> : vector<16x128xf32>
    %18 = tpu.matmul %0, %17, %cst_13 {dimension_numbers = #tpu.dot_dimension_numbers<[1], [0], [0], [1], [0, 0, 1, 1], [], []>} : vector<16x32xf32>, vector<32x128xf32>, vector<16x128xf32> -> vector<16x128xf32>
    %19 = arith.addf %16, %18 : vector<16x128xf32>
    %c2 = arith.constant 2 : index
    %c0_14 = arith.constant 0 : index
    %20 = vector.load %arg3[%c2, %c0_14] : memref<8x128xf32, #tpu.memory_space<vmem>>, vector<1x128xf32>
    %21 = vector.broadcast %20 : vector<1x128xf32> to vector<16x128xf32>
    %22 = arith.addf %19, %21 : vector<16x128xf32>
    %c0_15 = arith.constant 0 : index
    %c0_16 = arith.constant 0 : index
    %23 = vector.load %arg4[%c0_15, %c0_16] : memref<16x128xf32, #tpu.memory_space<vmem>>, vector<16x128xf32>
    tpu.vector_store %arg4[%c0_15, %c0_16], %22 {strides = array<i32>} : memref<16x128xf32, #tpu.memory_space<vmem>>, vector<16x128xf32>,
    return
  }
  func.func @transform_0(%arg0: i32) -> (i32, i32) {
    %c0_i32 = arith.constant 0 : i32
    %c0_i32_0 = arith.constant 0 : i32
    return %arg0, %c0_i32 : i32, i32
  }
  func.func @transform_1(%arg0: i32) -> (i32, i32) {
    %c0_i32 = arith.constant 0 : i32
    %c0_i32_0 = arith.constant 0 : i32
    %c0_i32_1 = arith.constant 0 : i32
    return %c0_i32, %c0_i32_0 : i32, i32
  }
  func.func @transform_2(%arg0: i32) -> (i32, i32) {
    %c0_i32 = arith.constant 0 : i32
    %c0_i32_0 = arith.constant 0 : i32
    %c0_i32_1 = arith.constant 0 : i32
    return %c0_i32, %c0_i32_0 : i32, i32
  }
  func.func @transform_3(%arg0: i32) -> (i32, i32) {
    %c0_i32 = arith.constant 0 : i32
    %c0_i32_0 = arith.constant 0 : i32
    return %arg0, %c0_i32 : i32, i32
  }
}

</mosaic_0001>

<llo_original>
// kernel: tpu_custom_call.1
$region0: #{tpu_custom_call.1}
  #allocation0 [shape = 'u32[]', space=smem, size = 0x4, offset = 0x4, fixed_abs, tag = 'smem constant byte address 0x4 - core index']
  #allocation1 [shape = 'u32[144,128]{1,0:T(1,128)}', space=vmem, size = 0x12000, scoped, tag = 'internal scratch']
  %s0 = inlined_call_operand.hbm [shape: f32[16,32], index: 0, kind: input, shape index: {}]
  %s1 = inlined_call_operand.hbm [shape: f32[320,128], index: 1, kind: input, shape index: {}]
  %s2 = inlined_call_operand.hbm [shape: f32[8,128], index: 2, kind: input, shape index: {}]
  %s3 = inlined_call_operand.hbm [shape: f32[16,128], index: 3, kind: output, shape index: {}]
  %s4 = sld [smem:[#allocation0]]
  $region34: #{tpu_custom_call.1} parent=0
    _
  %s6 = ssub.s32 1, %s4
  %s7 = scalar_select 0, %s6, %s4
  $region1: #{tpu_custom_call.1} parent=0
    #allocation2 [shape = 'u8[8192]{0}', space=vmem, size = 0x2000, scoped, tag = 'input window, operand 0, single buffered']
    #allocation3 [shape = 's32[1]{0}', space=sflag, size = 0x4, scoped, tag = 'scoped memory for tpu_custom_call.1']
    #allocation4 [shape = 's32[1]{0}', space=sflag, size = 0x4, scoped, tag = 'scoped memory for tpu_custom_call.1']
    #allocation5 [shape = 'u8[163840]{0}', space=vmem, size = 0x28000, scoped, tag = 'input window, operand 1, single buffered']
    #allocation6 [shape = 's32[1]{0}', space=sflag, size = 0x4, scoped, tag = 'scoped memory for tpu_custom_call.1']
    #allocation7 [shape = 'u8[4096]{0}', space=vmem, size = 0x1000, scoped, tag = 'input window, operand 2, single buffered']
    #allocation8 [shape = 'u8[8192]{0}', space=vmem, size = 0x2000, scoped, tag = 'output window, operand 0, single buffered']
    %8 = vsyncpa [#allocation3], 0
    %9 = vsyncpa [#allocation6], 0
    %10 = vsyncpa [#allocation4], 0
    // Predicated region
    $region2: #{tpu_custom_call.1} parent=1 // pred_check
      _
    $region3: #{tpu_custom_call.1} parent=1 // pred_check_branch
      %12 = sbr.rel (0) target = $region5
    $region4: #{tpu_custom_call.1} parent=1 // pred_region
      %s14 = ssub.s32 256, 256
      %15 = vsyncadd [#allocation3], %s14
      %s16 = sshll.u32 [#allocation2], 4
      %s17 = int_to_ptr.vmem [resolvable:$true] %s16
      %22 = dma.hbm_to_vmem [thread:$0]  %s0, 256, %s17, [#allocation3], 128, 128, 8
    $region5: #{tpu_custom_call.1} parent=1 // pred_fallthru
      _
    // Predicated region
    $region6: #{tpu_custom_call.1} parent=1 // pred_check
      _
    $region7: #{tpu_custom_call.1} parent=1 // pred_check_branch
      %24 = sbr.rel (0) target = $region9
    $region8: #{tpu_custom_call.1} parent=1 // pred_region
      %s26 = ssub.s32 5120, 5120
      %27 = vsyncadd [#allocation6], %s26
      %s28 = sshll.u32 [#allocation5], 4
      %s29 = int_to_ptr.vmem [resolvable:$true] %s28
      %34 = dma.hbm_to_vmem [thread:$0]  %s1, 5120, %s29, [#allocation6], 128, 128, 8
    $region9: #{tpu_custom_call.1} parent=1 // pred_fallthru
      _
    // Predicated region
    $region10: #{tpu_custom_call.1} parent=1 // pred_check
      _
    $region11: #{tpu_custom_call.1} parent=1 // pred_check_branch
      %36 = sbr.rel (0) target = $region13
    $region12: #{tpu_custom_call.1} parent=1 // pred_region
      %s38 = ssub.s32 128, 128
      %39 = vsyncadd [#allocation6], %s38
      %s41 = sshll.u32 [#allocation7], 4
      %s42 = int_to_ptr.vmem [resolvable:$true] %s41
      %44 = dma.hbm_to_vmem [thread:$0]  %s2, 128, %s42, [#allocation6]
    $region13: #{tpu_custom_call.1} parent=1 // pred_fallthru
      _
    // Predicated region
    $region14: #{tpu_custom_call.1} parent=1 // pred_check
      _
    $region15: #{tpu_custom_call.1} parent=1 // pred_check_branch
      %46 = sbr.rel (0) target = $region17
    $region16: #{tpu_custom_call.1} parent=1 // pred_region
      %47 = dma.done [#allocation3], 256
    $region17: #{tpu_custom_call.1} parent=1 // pred_fallthru
      _
    // Predicated region
    $region18: #{tpu_custom_call.1} parent=1 // pred_check
      _
    $region19: #{tpu_custom_call.1} parent=1 // pred_check_branch
      %49 = sbr.rel (0) target = $region21
    $region20: #{tpu_custom_call.1} parent=1 // pred_region
      %50 = dma.done [#allocation6], 5120
    $region21: #{tpu_custom_call.1} parent=1 // pred_fallthru
      _
    // Predicated region
    $region22: #{tpu_custom_call.1} parent=1 // pred_check
      _
    $region23: #{tpu_custom_call.1} parent=1 // pred_check_branch
      %52 = sbr.rel (0) target = $region25
    $region24: #{tpu_custom_call.1} parent=1 // pred_region
      %53 = dma.done [#allocation6], 128
    $region25: #{tpu_custom_call.1} parent=1 // pred_fallthru
      _
    %v54 = vld [vmem:[#allocation2] sm:$0xff]
    %v55 = vld [vmem:[#allocation2 + $0x8] sm:$0xff]
    %v56 = vld [vmem:[#allocation5] sm:$0xff]
    %v57 = vld [vmem:[#allocation5 + $0x8] sm:$0xff]
    %v58 = vld [vmem:[#allocation5 + $0x10] sm:$0xff]
    %v59 = vld [vmem:[#allocation5 + $0x18] sm:$0xff]
    %v60 = vld [vmem:[#allocation7] sm:$0x1]
    %v61 = vlaneseq
    %v62 = vshrl.u32 %v61, 7
    %v63 = vsub.s32 0, %v62
    %v64 = vrot.slane %v60, %v63
    %vm65 = vcmask 261120
    %v67 = vsel %vm65, %v54, 0
    %v70 = vsel %vm65, %v55, 0
    %72 = vmatprep.subr.mxu0 0.0
    %73 = vmatpush1.msra.mxu0 0.0
    %74 = vmatprep.subr.mxu0 0.0
    %75 = vmatpush1.msra.mxu0 0.0
    %76 = vmatprep.subr.mxu0 0.0
    %77 = vmatpush1.msra.mxu0 0.0
    %78 = vmatprep.subr.mxu0 0.0
    %79 = vmatpush1.msra.mxu0 0.0
    %80 = vmatprep.subr.mxu0 0.0
    %81 = vmatpush1.msra.mxu0 0.0
    %82 = vmatprep.subr.mxu0 0.0
    %83 = vmatpush1.msra.mxu0 0.0
    %84 = vmatprep.subr.mxu0 0.0
    %85 = vmatpush1.msra.mxu0 0.0
    %86 = vmatprep.subr.mxu0 0.0
    %87 = vmatpush1.msra.mxu0 0.0
    %88 = vmatprep.subr.mxu0 0.0
    %89 = vmatpush1.msra.mxu0 0.0
    %90 = vmatprep.subr.mxu0 0.0
    %91 = vmatpush1.msra.mxu0 0.0
    %92 = vmatprep.subr.mxu0 0.0
    %93 = vmatpush1.msra.mxu0 0.0
    %94 = vmatprep.subr.mxu0 0.0
    %95 = vmatpush1.msra.mxu0 0.0
    %96 = vmatprep.subr.mxu0 0.0
    %97 = vmatpush1.msra.mxu0 %v59
    %98 = vmatprep.subr.mxu0 0.0
    %99 = vmatpush1.msra.mxu0 %v58
    %100 = vmatprep.subr.mxu0 0.0
    %101 = vmatpush1.msra.mxu0 %v57
    %102 = vmatprep.subr.mxu0 0.0
    %103 = vmatpush1.msra.mxu0 %v56
    %104 = vmatprep.subr.mxu0 0.0
    %105 = vmatpush2.msra.mxu0 0.0
    %106 = vmatprep.subr.mxu0 0.0
    %107 = vmatpush2.msra.mxu0 0.0
    %108 = vmatprep.subr.mxu0 0.0
    %109 = vmatpush2.msra.mxu0 0.0
    %110 = vmatprep.subr.mxu0 0.0
    %111 = vmatpush2.msra.mxu0 0.0
    %112 = vmatprep.subr.mxu0 0.0
    %113 = vmatpush2.msra.mxu0 0.0
    %114 = vmatprep.subr.mxu0 0.0
    %115 = vmatpush2.msra.mxu0 0.0
    %116 = vmatprep.subr.mxu0 0.0
    %117 = vmatpush2.msra.mxu0 0.0
    %118 = vmatprep.subr.mxu0 0.0
    %119 = vmatpush2.msra.mxu0 0.0
    %120 = vmatprep.subr.mxu0 0.0
    %121 = vmatpush2.msra.mxu0 0.0
    %122 = vmatprep.subr.mxu0 0.0
    %123 = vmatpush2.msra.mxu0 0.0
    %124 = vmatprep.subr.mxu0 0.0
    %125 = vmatpush2.msra.mxu0 0.0
    %126 = vmatprep.subr.mxu0 0.0
    %127 = vmatpush2.msra.mxu0 0.0
    %128 = vmatprep.subr.mxu0 0.0
    %129 = vmatpush2.msra.mxu0 0.0
    %130 = vmatprep.subr.mxu0 0.0
    %131 = vmatpush2.msra.mxu0 0.0
    %132 = vmatprep.subr.mxu0 0.0
    %133 = vmatpush2.msra.mxu0 0.0
    %134 = vmatprep.subr.mxu0 0.0
    %135 = vmatpush2.msra.mxu0 0.0
    %136 = vmatprep.mubr.f32.mxu0 0.0
    %137 = vmatmul.mubr.f32.gmra.mxu0 %v67
    %v138 = vpop.f32.mrf.mxu0
    %v139 = vadd.f32 %v64, %v138
    %v140 = vpop.f32.mrf.mxu0
    %141 = vmatprep.mubr.f32.mxu0 0.0
    %142 = vmatmul.mubr.f32.gmra.mxu0 %v70
    %v143 = vpop.f32.mrf.mxu0
    %v144 = vadd.f32 %v64, %v143
    %v145 = vpop.f32.mrf.mxu0
    %146 = vdwg.mxu0
    %v147 = vmax.f32 %v139, 0.0
    %v148 = vmax.f32 %v144, 0.0
    %v149 = vld [vmem:[#allocation5 + $0x20] sm:$0xff]
    %v150 = vld [vmem:[#allocation5 + $0x28] sm:$0xff]
    %v151 = vld [vmem:[#allocation5 + $0x30] sm:$0xff]
    %v152 = vld [vmem:[#allocation5 + $0x38] sm:$0xff]
    %v153 = vld [vmem:[#allocation5 + $0x40] sm:$0xff]
    %v154 = vld [vmem:[#allocation5 + $0x48] sm:$0xff]
    %v155 = vld [vmem:[#allocation5 + $0x50] sm:$0xff]
    %v156 = vld [vmem:[#allocation5 + $0x58] sm:$0xff]
    %v157 = vld [vmem:[#allocation5 + $0x60] sm:$0xff]
    %v158 = vld [vmem:[#allocation5 + $0x68] sm:$0xff]
    %v159 = vld [vmem:[#allocation5 + $0x70] sm:$0xff]
    %v160 = vld [vmem:[#allocation5 + $0x78] sm:$0xff]
    %v161 = vld [vmem:[#allocation5 + $0x80] sm:$0xff]
    %v162 = vld [vmem:[#allocation5 + $0x88] sm:$0xff]
    %v163 = vld [vmem:[#allocation5 + $0x90] sm:$0xff]
    %v164 = vld [vmem:[#allocation5 + $0x98] sm:$0xff]
    %v165 = vld [vmem:[#allocation7 + $0x1] sm:$0x1]
    %v166 = vlaneseq
    %v167 = vshrl.u32 %v166, 7
    %v168 = vsub.s32 0, %v167
    %v169 = vrot.slane %v165, %v168
    %170 = vmatprep.subr.mxu0 0.0
    %171 = vmatpush1.msra.mxu0 %v164
    %172 = vmatprep.subr.mxu0 0.0
    %173 = vmatpush1.msra.mxu0 %v163
    %174 = vmatprep.subr.mxu0 0.0
    %175 = vmatpush1.msra.mxu0 %v162
    %176 = vmatprep.subr.mxu0 0.0
    %177 = vmatpush1.msra.mxu0 %v161
    %178 = vmatprep.subr.mxu0 0.0
    %179 = vmatpush1.msra.mxu0 %v160
    %180 = vmatprep.subr.mxu0 0.0
    %181 = vmatpush1.msra.mxu0 %v159
    %182 = vmatprep.subr.mxu0 0.0
    %183 = vmatpush1.msra.mxu0 %v158
    %184 = vmatprep.subr.mxu0 0.0
    %185 = vmatpush1.msra.mxu0 %v157
    %186 = vmatprep.subr.mxu0 0.0
    %187 = vmatpush1.msra.mxu0 %v156
    %188 = vmatprep.subr.mxu0 0.0
    %189 = vmatpush1.msra.mxu0 %v155
    %190 = vmatprep.subr.mxu0 0.0
    %191 = vmatpush1.msra.mxu0 %v154
    %192 = vmatprep.subr.mxu0 0.0
    %193 = vmatpush1.msra.mxu0 %v153
    %194 = vmatprep.subr.mxu0 0.0
    %195 = vmatpush1.msra.mxu0 %v152
    %196 = vmatprep.subr.mxu0 0.0
    %197 = vmatpush1.msra.mxu0 %v151
    %198 = vmatprep.subr.mxu0 0.0
    %199 = vmatpush1.msra.mxu0 %v150
    %200 = vmatprep.subr.mxu0 0.0
    %201 = vmatpush1.msra.mxu0 %v149
    %202 = vmatprep.subr.mxu0 0.0
    %203 = vmatpush2.msra.mxu0 0.0
    %204 = vmatprep.subr.mxu0 0.0
    %205 = vmatpush2.msra.mxu0 0.0
    %206 = vmatprep.subr.mxu0 0.0
    %207 = vmatpush2.msra.mxu0 0.0
    %208 = vmatprep.subr.mxu0 0.0
    %209 = vmatpush2.msra.mxu0 0.0
    %210 = vmatprep.subr.mxu0 0.0
    %211 = vmatpush2.msra.mxu0 0.0
    %212 = vmatprep.subr.mxu0 0.0
    %213 = vmatpush2.msra.mxu0 0.0
    %214 = vmatprep.subr.mxu0 0.0
    %215 = vmatpush2.msra.mxu0 0.0
    %216 = vmatprep.subr.mxu0 0.0
    %217 = vmatpush2.msra.mxu0 0.0
    %218 = vmatprep.subr.mxu0 0.0
    %219 = vmatpush2.msra.mxu0 0.0
    %220 = vmatprep.subr.mxu0 0.0
    %221 = vmatpush2.msra.mxu0 0.0
    %222 = vmatprep.subr.mxu0 0.0
    %223 = vmatpush2.msra.mxu0 0.0
    %224 = vmatprep.subr.mxu0 0.0
    %225 = vmatpush2.msra.mxu0 0.0
    %226 = vmatprep.subr.mxu0 0.0
    %227 = vmatpush2.msra.mxu0 0.0
    %228 = vmatprep.subr.mxu0 0.0
    %229 = vmatpush2.msra.mxu0 0.0
    %230 = vmatprep.subr.mxu0 0.0
    %231 = vmatpush2.msra.mxu0 0.0
    %232 = vmatprep.subr.mxu0 0.0
    %233 = vmatpush2.msra.mxu0 0.0
    %234 = vmatprep.mubr.f32.mxu0 0.0
    %235 = vmatmul.mubr.f32.gmra.mxu0 %v147
    %v236 = vpop.f32.mrf.mxu0
    %v237 = vadd.f32 %v169, %v236
    %v238 = vpop.f32.mrf.mxu0
    %239 = vmatprep.mubr.f32.mxu0 0.0
    %240 = vmatmul.mubr.f32.gmra.mxu0 %v148
    %v241 = vpop.f32.mrf.mxu0
    %v242 = vadd.f32 %v169, %v241
    %v243 = vpop.f32.mrf.mxu0
    %244 = vdwg.mxu0
    %v245 = vmax.f32 %v237, 0.0
    %v246 = vmax.f32 %v242, 0.0
    %v247 = vld [vmem:[#allocation5 + $0xa0] sm:$0xff]
    %v248 = vld [vmem:[#allocation5 + $0xa8] sm:$0xff]
    %v249 = vld [vmem:[#allocation5 + $0xb0] sm:$0xff]
    %v250 = vld [vmem:[#allocation5 + $0xb8] sm:$0xff]
    %v251 = vld [vmem:[#allocation5 + $0xc0] sm:$0xff]
    %v252 = vld [vmem:[#allocation5 + $0xc8] sm:$0xff]
    %v253 = vld [vmem:[#allocation5 + $0xd0] sm:$0xff]
    %v254 = vld [vmem:[#allocation5 + $0xd8] sm:$0xff]
    %v255 = vld [vmem:[#allocation5 + $0xe0] sm:$0xff]
    %v256 = vld [vmem:[#allocation5 + $0xe8] sm:$0xff]
    %v257 = vld [vmem:[#allocation5 + $0xf0] sm:$0xff]
    %v258 = vld [vmem:[#allocation5 + $0xf8] sm:$0xff]
    %v259 = vld [vmem:[#allocation5 + $0x100] sm:$0xff]
    %v260 = vld [vmem:[#allocation5 + $0x108] sm:$0xff]
    %v261 = vld [vmem:[#allocation5 + $0x110] sm:$0xff]
    %v262 = vld [vmem:[#allocation5 + $0x118] sm:$0xff]
    %v263 = vld [vmem:[#allocation5 + $0x120] sm:$0xff]
    %v264 = vld [vmem:[#allocation5 + $0x128] sm:$0xff]
    %v265 = vld [vmem:[#allocation5 + $0x130] sm:$0xff]
    %v266 = vld [vmem:[#allocation5 + $0x138] sm:$0xff]
    %267 = vmatprep.subr.mxu0 0.0
    %268 = vmatpush1.msra.mxu0 0.0
    %269 = vmatprep.subr.mxu0 0.0
    %270 = vmatpush1.msra.mxu0 0.0
    %271 = vmatprep.subr.mxu0 0.0
    %272 = vmatpush1.msra.mxu0 0.0
    %273 = vmatprep.subr.mxu0 0.0
    %274 = vmatpush1.msra.mxu0 0.0
    %275 = vmatprep.subr.mxu0 0.0
    %276 = vmatpush1.msra.mxu0 0.0
    %277 = vmatprep.subr.mxu0 0.0
    %278 = vmatpush1.msra.mxu0 0.0
    %279 = vmatprep.subr.mxu0 0.0
    %280 = vmatpush1.msra.mxu0 0.0
    %281 = vmatprep.subr.mxu0 0.0
    %282 = vmatpush1.msra.mxu0 0.0
    %283 = vmatprep.subr.mxu0 0.0
    %284 = vmatpush1.msra.mxu0 0.0
    %285 = vmatprep.subr.mxu0 0.0
    %286 = vmatpush1.msra.mxu0 0.0
    %287 = vmatprep.subr.mxu0 0.0
    %288 = vmatpush1.msra.mxu0 0.0
    %289 = vmatprep.subr.mxu0 0.0
    %290 = vmatpush1.msra.mxu0 0.0
    %291 = vmatprep.subr.mxu0 0.0
    %292 = vmatpush1.msra.mxu0 %v266
    %293 = vmatprep.subr.mxu0 0.0
    %294 = vmatpush1.msra.mxu0 %v265
    %295 = vmatprep.subr.mxu0 0.0
    %296 = vmatpush1.msra.mxu0 %v264
    %297 = vmatprep.subr.mxu0 0.0
    %298 = vmatpush1.msra.mxu0 %v263
    %299 = vmatprep.subr.mxu0 0.0
    %300 = vmatpush2.msra.mxu0 0.0
    %301 = vmatprep.subr.mxu0 0.0
    %302 = vmatpush2.msra.mxu0 0.0
    %303 = vmatprep.subr.mxu0 0.0
    %304 = vmatpush2.msra.mxu0 0.0
    %305 = vmatprep.subr.mxu0 0.0
    %306 = vmatpush2.msra.mxu0 0.0
    %307 = vmatprep.subr.mxu0 0.0
    %308 = vmatpush2.msra.mxu0 0.0
    %309 = vmatprep.subr.mxu0 0.0
    %310 = vmatpush2.msra.mxu0 0.0
    %311 = vmatprep.subr.mxu0 0.0
    %312 = vmatpush2.msra.mxu0 0.0
    %313 = vmatprep.subr.mxu0 0.0
    %314 = vmatpush2.msra.mxu0 0.0
    %315 = vmatprep.subr.mxu0 0.0
    %316 = vmatpush2.msra.mxu0 0.0
    %317 = vmatprep.subr.mxu0 0.0
    %318 = vmatpush2.msra.mxu0 0.0
    %319 = vmatprep.subr.mxu0 0.0
    %320 = vmatpush2.msra.mxu0 0.0
    %321 = vmatprep.subr.mxu0 0.0
    %322 = vmatpush2.msra.mxu0 0.0
    %323 = vmatprep.subr.mxu0 0.0
    %324 = vmatpush2.msra.mxu0 0.0
    %325 = vmatprep.subr.mxu0 0.0
    %326 = vmatpush2.msra.mxu0 0.0
    %327 = vmatprep.subr.mxu0 0.0
    %328 = vmatpush2.msra.mxu0 0.0
    %329 = vmatprep.subr.mxu0 0.0
    %330 = vmatpush2.msra.mxu0 0.0
    %331 = vmatprep.mubr.f32.mxu0 0.0
    %332 = vmatmul.mubr.f32.gmra.mxu0 %v67
    %v333 = vpop.f32.mrf.mxu0
    %v334 = vadd.f32 0.0, %v333
    %v335 = vpop.f32.mrf.mxu0
    %336 = vmatprep.mubr.f32.mxu0 0.0
    %337 = vmatmul.mubr.f32.gmra.mxu0 %v70
    %v338 = vpop.f32.mrf.mxu0
    %v339 = vadd.f32 0.0, %v338
    %v340 = vpop.f32.mrf.mxu0
    %341 = vdwg.mxu0
    %342 = vmatprep.subr.mxu0 0.0
    %343 = vmatpush1.msra.mxu0 %v262
    %344 = vmatprep.subr.mxu0 0.0
    %345 = vmatpush1.msra.mxu0 %v261
    %346 = vmatprep.subr.mxu0 0.0
    %347 = vmatpush1.msra.mxu0 %v260
    %348 = vmatprep.subr.mxu0 0.0
    %349 = vmatpush1.msra.mxu0 %v259
    %350 = vmatprep.subr.mxu0 0.0
    %351 = vmatpush1.msra.mxu0 %v258
    %352 = vmatprep.subr.mxu0 0.0
    %353 = vmatpush1.msra.mxu0 %v257
    %354 = vmatprep.subr.mxu0 0.0
    %355 = vmatpush1.msra.mxu0 %v256
    %356 = vmatprep.subr.mxu0 0.0
    %357 = vmatpush1.msra.mxu0 %v255
    %358 = vmatprep.subr.mxu0 0.0
    %359 = vmatpush1.msra.mxu0 %v254
    %360 = vmatprep.subr.mxu0 0.0
    %361 = vmatpush1.msra.mxu0 %v253
    %362 = vmatprep.subr.mxu0 0.0
    %363 = vmatpush1.msra.mxu0 %v252
    %364 = vmatprep.subr.mxu0 0.0
    %365 = vmatpush1.msra.mxu0 %v251
    %366 = vmatprep.subr.mxu0 0.0
    %367 = vmatpush1.msra.mxu0 %v250
    %368 = vmatprep.subr.mxu0 0.0
    %369 = vmatpush1.msra.mxu0 %v249
    %370 = vmatprep.subr.mxu0 0.0
    %371 = vmatpush1.msra.mxu0 %v248
    %372 = vmatprep.subr.mxu0 0.0
    %373 = vmatpush1.msra.mxu0 %v247
    %374 = vmatprep.subr.mxu0 0.0
    %375 = vmatpush2.msra.mxu0 0.0
    %376 = vmatprep.subr.mxu0 0.0
    %377 = vmatpush2.msra.mxu0 0.0
    %378 = vmatprep.subr.mxu0 0.0
    %379 = vmatpush2.msra.mxu0 0.0
    %380 = vmatprep.subr.mxu0 0.0
    %381 = vmatpush2.msra.mxu0 0.0
    %382 = vmatprep.subr.mxu0 0.0
    %383 = vmatpush2.msra.mxu0 0.0
    %384 = vmatprep.subr.mxu0 0.0
    %385 = vmatpush2.msra.mxu0 0.0
    %386 = vmatprep.subr.mxu0 0.0
    %387 = vmatpush2.msra.mxu0 0.0
    %388 = vmatprep.subr.mxu0 0.0
    %389 = vmatpush2.msra.mxu0 0.0
    %390 = vmatprep.subr.mxu0 0.0
    %391 = vmatpush2.msra.mxu0 0.0
    %392 = vmatprep.subr.mxu0 0.0
    %393 = vmatpush2.msra.mxu0 0.0
    %394 = vmatprep.subr.mxu0 0.0
    %395 = vmatpush2.msra.mxu0 0.0
    %396 = vmatprep.subr.mxu0 0.0
    %397 = vmatpush2.msra.mxu0 0.0
    %398 = vmatprep.subr.mxu0 0.0
    %399 = vmatpush2.msra.mxu0 0.0
    %400 = vmatprep.subr.mxu0 0.0
    %401 = vmatpush2.msra.mxu0 0.0
    %402 = vmatprep.subr.mxu0 0.0
    %403 = vmatpush2.msra.mxu0 0.0
    %404 = vmatprep.subr.mxu0 0.0
    %405 = vmatpush2.msra.mxu0 0.0
    %406 = vmatprep.mubr.f32.mxu0 0.0
    %407 = vmatmul.mubr.f32.gmra.mxu0 %v245
    %v408 = vpop.f32.mrf.mxu0
    %v409 = vadd.f32 %v334, %v408
    %v410 = vpop.f32.mrf.mxu0
    %411 = vmatprep.mubr.f32.mxu0 0.0
    %412 = vmatmul.mubr.f32.gmra.mxu0 %v246
    %v413 = vpop.f32.mrf.mxu0
    %v414 = vadd.f32 %v339, %v413
    %v415 = vpop.f32.mrf.mxu0
    %416 = vdwg.mxu0
    %v417 = vld [vmem:[#allocation7 + $0x2] sm:$0x1]
    %v418 = vlaneseq
    %v419 = vshrl.u32 %v418, 7
    %v420 = vsub.s32 0, %v419
    %v421 = vrot.slane %v417, %v420
    %v422 = vadd.f32 %v409, %v421
    %v423 = vadd.f32 %v414, %v421
    %424 = vst [vmem:[#allocation8] sm:$0xff] %v422
    %425 = vst [vmem:[#allocation8 + $0x8] sm:$0xff] %v423
    // Predicated region
    $region26: #{tpu_custom_call.1} parent=1 // pred_check
      _
    $region27: #{tpu_custom_call.1} parent=1 // pred_check_branch
      %427 = sbr.rel (0) target = $region29
    $region28: #{tpu_custom_call.1} parent=1 // pred_region
      %s429 = ssub.s32 256, 256
      %430 = vsyncadd [#allocation4], %s429
      %s431 = sshll.u32 [#allocation8], 4
      %s432 = int_to_ptr.vmem [resolvable:$true] %s431
      %437 = dma.vmem_to_hbm [thread:$0]  %s432, 256, %s3, [#allocation4], 128, 128, 8
    $region29: #{tpu_custom_call.1} parent=1 // pred_fallthru
      _
    // Predicated region
    $region30: #{tpu_custom_call.1} parent=1 // pred_check
      _
    $region31: #{tpu_custom_call.1} parent=1 // pred_check_branch
      %439 = sbr.rel (0) target = $region33
    $region32: #{tpu_custom_call.1} parent=1 // pred_region
      %440 = dma.done [#allocation4], 256
    $region33: #{tpu_custom_call.1} parent=1 // pred_fallthru
      _
    %441 = vsyncpa [#allocation3], 1
    %442 = vsyncpa [#allocation6], 1
    %443 = vsyncpa [#allocation4], 1

</llo_original>
